<compile_context>
chip_gen: v7x
topology: tpu7x:2x2x1
jax: 0.10.0
libtpu: 0.0.40
codegen_flags: <defaults>
</compile_context>

<pallas_src>
import functools

import jax
import jax.numpy as jnp
from jax.experimental import pallas as pl
from jax.experimental.pallas import tpu as pltpu

_INV_SQRT2 = 0.7071067811865476      # 1/sqrt(2), hoisted
_SQRT_2_OVER_PI = 0.7978845608028654


def _ffn_kernel(x_ref, w_in_ref, b_in_ref, w_out_ref, b_out_ref, o_ref,
                *acc_scratch, approximate_gelu=False):
    # x_ref:     (TM, Hp)   tile of input rows
    # w_in_ref:  (Hp, TD)   DFF chunk of W_in
    # b_in_ref:  (1, TD)
    # w_out_ref: (TD, Hp)   DFF chunk of W_out
    # b_out_ref: (1, Hp)
    # o_ref:     (TM, Hp)   resident across the DFF (k) axis
    # acc_scratch: () when o_ref is f32 (accumulate directly into o_ref),
    #              otherwise a single (TM, Hp) f32 VMEM accumulator.
    acc_ref = acc_scratch[0] if acc_scratch else o_ref
    k = pl.program_id(1)

    # First linear (this DFF chunk): native-dtype MXU feed, f32 accumulation.
    h = jnp.dot(x_ref[...], w_in_ref[...], preferred_element_type=jnp.float32)
    h = h + b_in_ref[...].astype(jnp.float32)

    if approximate_gelu:
        # tanh approximation -> EUP slot (cheaper on v5e); off by default.
        h = 0.5 * h * (1.0 + jnp.tanh(_SQRT_2_OVER_PI * (h + 0.044715 * h * h * h)))
    else:
        # Exact erf-based GELU (matches torch.nn.functional.gelu default).
        h = 0.5 * h * (1.0 + jax.lax.erf(h * _INV_SQRT2))

    # Second linear (this DFF chunk).
    contrib = jnp.dot(h.astype(w_out_ref.dtype), w_out_ref[...],
                      preferred_element_type=jnp.float32)

    @pl.when(k == 0)
    def _():
        acc_ref[...] = contrib.astype(acc_ref.dtype)

    @pl.when(k != 0)
    def _():
        acc_ref[...] += contrib.astype(acc_ref.dtype)

    @pl.when(k == pl.num_programs(1) - 1)
    def _():
        # NOTE: pad rows of a partial last row tile hold garbage here; they
        # are dropped by the masked partial store on writeback.
        o_ref[...] = (acc_ref[...].astype(jnp.float32)
                      + b_out_ref[...].astype(jnp.float32)).astype(o_ref.dtype)


def _round_up(x, m):
    return ((x + m - 1) // m) * m


def _usable_vmem_bytes():
    """Per-generation VMEM budget (75% of physical; 64 MiB v7x fallback)."""
    cap = 64 << 20
    try:
        info = pltpu.get_tpu_info()
        cap = int(getattr(info, "vmem_capacity_bytes", cap))
    except Exception:
        pass
    return int(cap * 0.75)


def _vmem_footprint_bytes(tm, td, h_pad, in_bytes, out_bytes, use_scratch):
    """Rough VMEM footprint: double-buffered blocks + optional f32 acc."""
    x_blk = tm * h_pad * in_bytes
    w_in_blk = h_pad * td * in_bytes
    w_out_blk = td * h_pad * in_bytes
    b_in_blk = 8 * td * in_bytes          # (1, td) pads to 8 sublanes
    b_out_blk = 8 * h_pad * in_bytes
    o_blk = tm * h_pad * out_bytes
    total = 2 * (x_blk + w_in_blk + w_out_blk + b_in_blk + b_out_blk + o_blk)
    if use_scratch:
        total += tm * h_pad * 4
    return total


def _select_tiles(n_rows, h_pad, dff, in_bytes, out_bytes, use_scratch,
                  tm_target, td_target, budget):
    """Pick (row tile, DFF chunk, padded DFF) that fit the VMEM budget."""
    tm = max(8, min(_round_up(tm_target, 8), _round_up(n_rows, 8)))
    # v7x has 2 TensorCores sharing the "parallel" row axis: guarantee >= 2
    # row tiles whenever there is more than one sublane-group of rows.
    if n_rows > 8 and pl.cdiv(n_rows, tm) < 2:
        tm = max(8, _round_up(pl.cdiv(n_rows, 2), 8))

    dff128 = _round_up(dff, 128)

    def fits(tm_, td_):
        return _vmem_footprint_bytes(tm_, td_, h_pad, in_bytes, out_bytes,
                                     use_scratch) <= budget

    while True:
        # Fast path: full W_in / W_out resident (single DFF chunk).  Their
        # block index is then constant over the whole grid, so they are DMA'd
        # from HBM exactly once instead of once per row tile.
        if fits(tm, dff128):
            return tm, dff128, dff128
        # Otherwise stream DFF in lane-aligned chunks that fit the budget,
        # balancing chunk sizes so DFF padding waste stays < 128 per chunk.
        td_cap = min(dff128, max(128, (td_target // 128) * 128))
        while td_cap > 128 and not fits(tm, td_cap):
            td_cap -= 128
        if fits(tm, td_cap):
            n_chunks = pl.cdiv(dff128, td_cap)
            td = _round_up(pl.cdiv(dff128, n_chunks), 128)
            return tm, td, td * n_chunks
        # Even a single 128-wide chunk doesn't fit: shrink row tile, retry.
        if tm <= 8:
            return 8, 128, _round_up(dff128, 128)
        tm = max(8, _round_up(tm // 2, 8))


@functools.partial(jax.jit, static_argnames=("tm", "dff_chunk_target",
                                             "approximate_gelu",
                                             "compute_dtype"))
def position_wise_feed_forward(h_V, w_in, b_in, w_out, b_out, *,
                               tm=512, dff_chunk_target=512,
                               approximate_gelu=False, compute_dtype=None):
    """h_V: [..., H].  Returns same shape/dtype as h_V."""
    orig_shape = h_V.shape
    H = orig_shape[-1]
    DFF = w_in.shape[1]
    out_dtype = h_V.dtype

    if compute_dtype is not None:
        # Optional low-precision MXU feed (e.g. jnp.bfloat16): halves weight
        # HBM traffic, avoids multi-pass f32 MXU; accumulation stays f32.
        # Off by default to preserve exact f32 semantics.
        h_V = h_V.astype(compute_dtype)
        w_in = w_in.astype(compute_dtype)
        b_in = b_in.astype(compute_dtype)
        w_out = w_out.astype(compute_dtype)
        b_out = b_out.astype(compute_dtype)

    x = h_V.reshape(-1, H)
    N = x.shape[0]

    in_bytes = x.dtype.itemsize
    out_bytes = jnp.dtype(out_dtype).itemsize
    use_scratch = jnp.dtype(out_dtype) != jnp.dtype(jnp.float32)

    # Lane-dense layout: pad hidden dim to a multiple of 128 so output stores
    # are unmasked vst and the first matmul's contraction isn't starved.
    H_pad = _round_up(H, 128)

    budget = _usable_vmem_bytes()
    tm_eff, td, DFF_pad = _select_tiles(N, H_pad, DFF, in_bytes, out_bytes,
                                        use_scratch, tm, dff_chunk_target,
                                        budget)

    # Zero-padding is exact: padded H columns hit zero W_in rows / W_out cols,
    # and padded DFF slots give gelu(0 + 0) == 0 times zero W_out rows.
    if H_pad != H:
        x = jnp.pad(x, ((0, 0), (0, H_pad - H)))
        w_in = jnp.pad(w_in, ((0, H_pad - H), (0, 0)))
        w_out = jnp.pad(w_out, ((0, 0), (0, H_pad - H)))
        b_out = jnp.pad(b_out, ((0, H_pad - H),))
    if DFF_pad != DFF:
        w_in = jnp.pad(w_in, ((0, 0), (0, DFF_pad - DFF)))
        b_in = jnp.pad(b_in, ((0, DFF_pad - DFF),))
        w_out = jnp.pad(w_out, ((0, DFF_pad - DFF), (0, 0)))

    grid = (pl.cdiv(N, tm_eff), DFF_pad // td)

    footprint = _vmem_footprint_bytes(tm_eff, td, H_pad, in_bytes, out_bytes,
                                      use_scratch)
    vmem_limit = int(min(max(footprint * 1.3 + (4 << 20), 32 << 20), budget))

    kernel = functools.partial(_ffn_kernel, approximate_gelu=approximate_gelu)
    scratch_shapes = ([pltpu.VMEM((tm_eff, H_pad), jnp.float32)]
                      if use_scratch else [])

    out = pl.pallas_call(
        kernel,
        out_shape=jax.ShapeDtypeStruct((N, H_pad), out_dtype),
        grid_spec=pltpu.PrefetchScalarGridSpec(
            num_scalar_prefetch=0,
            grid=grid,
            in_specs=[
                pl.BlockSpec((tm_eff, H_pad), lambda i, k: (i, 0)),  # x rows
                pl.BlockSpec((H_pad, td), lambda i, k: (0, k)),      # W_in chunk
                pl.BlockSpec((1, td), lambda i, k: (0, k)),          # b_in chunk
                pl.BlockSpec((td, H_pad), lambda i, k: (k, 0)),      # W_out chunk
                pl.BlockSpec((1, H_pad), lambda i, k: (0, 0)),       # b_out
            ],
            out_specs=pl.BlockSpec((tm_eff, H_pad), lambda i, k: (i, 0)),
            scratch_shapes=scratch_shapes,
        ),
        compiler_params=pltpu.CompilerParams(
            dimension_semantics=("parallel", "arbitrary"),
            vmem_limit_bytes=vmem_limit,
        ),
    )(x, w_in, b_in.reshape(1, DFF_pad), w_out, b_out.reshape(1, H_pad))

    if H_pad != H:
        out = out[:, :H]
    return out.reshape(orig_shape)


def init_params(key, num_hidden, num_dff, dtype=jnp.float32):
    """Deterministic init mimicking nn.Linear (uniform in +-1/sqrt(fan_in))."""
    k1, k2, k3, k4 = jax.random.split(key, 4)
    bound_in = 1.0 / (num_hidden ** 0.5)
    bound_out = 1.0 / (num_dff ** 0.5)
    # Stored transposed relative to torch (torch weight is [out, in]).
    w_in = jax.random.uniform(k1, (num_hidden, num_dff), dtype, -bound_in, bound_in)
    b_in = jax.random.uniform(k2, (num_dff,), dtype, -bound_in, bound_in)
    w_out = jax.random.uniform(k3, (num_dff, num_hidden), dtype, -bound_out, bound_out)
    b_out = jax.random.uniform(k4, (num_hidden,), dtype, -bound_out, bound_out)
    return w_in, b_in, w_out, b_out


if __name__ == "__main__":
    num_hidden = 32
    num_dff = 64
    batch, seq = 2, 8

    key = jax.random.PRNGKey(0)
    k_x, k_p = jax.random.split(key)

    h_V = jax.random.normal(k_x, (batch, seq, num_hidden), dtype=jnp.float32)
    w_in, b_in, w_out, b_out = init_params(k_p, num_hidden, num_dff)

    out = position_wise_feed_forward(h_V, w_in, b_in, w_out, b_out)
    jax.block_until_ready(out)

    # Pure-JAX reference check (exact-erf GELU, same as torch default).
    ref = jnp.dot(h_V, w_in) + b_in
    ref = 0.5 * ref * (1.0 + jax.lax.erf(ref / jnp.sqrt(2.0)))
    ref = jnp.dot(ref, w_out) + b_out
    assert out.shape == h_V.shape
    assert jnp.allclose(out, ref, atol=1e-4, rtol=1e-4)

    print("KERNEL_OK")
</pallas_src>

<mosaic_0001>
module attributes {stable_mosaic.version = 11 : i64} {
  func.func @_ffn_kernel(%arg0: i32, %arg1: i32, %arg2: memref<8x128xf32, #tpu.memory_space<vmem>>, %arg3: memref<128x128xf32, #tpu.memory_space<vmem>>, %arg4: memref<1x128xf32, #tpu.memory_space<vmem>>, %arg5: memref<128x128xf32, #tpu.memory_space<vmem>>, %arg6: memref<1x128xf32, #tpu.memory_space<vmem>>, %arg7: memref<8x128xf32, #tpu.memory_space<vmem>>) attributes {dimension_semantics = [#tpu.dimension_semantics<parallel>, #tpu.dimension_semantics<arbitrary>], iteration_bounds = array<i64: 2, 1>, scalar_prefetch = 0 : i64, scratch_operands = 0 : i64, tpu.core_type = #tpu.core_type<tc>, window_params = [{transform_indices = @transform_0, window_bounds = array<i64: 8, 128>}, {transform_indices = @transform_1, window_bounds = array<i64: 128, 128>}, {transform_indices = @transform_2, window_bounds = array<i64: 1, 128>}, {transform_indices = @transform_3, window_bounds = array<i64: 128, 128>}, {pipeline_mode = #tpu.pipeline_mode<synchronous>, transform_indices = @transform_4, window_bounds = array<i64: 1, 128>}, {transform_indices = @transform_5, window_bounds = array<i64: 8, 128>}]} {
    %c0 = arith.constant 0 : index
    %c0_0 = arith.constant 0 : index
    %0 = vector.load %arg2[%c0, %c0_0] : memref<8x128xf32, #tpu.memory_space<vmem>>, vector<8x128xf32>
    %c0_1 = arith.constant 0 : index
    %c0_2 = arith.constant 0 : index
    %1 = vector.load %arg3[%c0_1, %c0_2] : memref<128x128xf32, #tpu.memory_space<vmem>>, vector<128x128xf32>
    %cst = arith.constant dense<0.000000e+00> : vector<8x128xf32>
    %2 = tpu.matmul %0, %1, %cst {dimension_numbers = #tpu.dot_dimension_numbers<[1], [0], [0], [1], [0, 0, 1, 1], [], []>} : vector<8x128xf32>, vector<128x128xf32>, vector<8x128xf32> -> vector<8x128xf32>
    %c0_3 = arith.constant 0 : index
    %c0_4 = arith.constant 0 : index
    %3 = vector.load %arg4[%c0_3, %c0_4] : memref<1x128xf32, #tpu.memory_space<vmem>>, vector<1x128xf32>
    %4 = vector.broadcast %3 : vector<1x128xf32> to vector<8x128xf32>
    %5 = arith.addf %2, %4 : vector<8x128xf32>
    %cst_5 = arith.constant 5.000000e-01 : f32
    %6 = vector.broadcast %cst_5 : f32 to vector<8x128xf32>
    %7 = arith.mulf %6, %5 : vector<8x128xf32>
    %cst_6 = arith.constant 0.707106769 : f32
    %8 = vector.broadcast %cst_6 : f32 to vector<8x128xf32>
    %9 = arith.mulf %5, %8 : vector<8x128xf32>
    %10 = math.erf %9 : vector<8x128xf32>
    %cst_7 = arith.constant 1.000000e+00 : f32
    %11 = vector.broadcast %cst_7 : f32 to vector<8x128xf32>
    %12 = arith.addf %11, %10 : vector<8x128xf32>
    %13 = arith.mulf %7, %12 : vector<8x128xf32>
    %c0_8 = arith.constant 0 : index
    %c0_9 = arith.constant 0 : index
    %14 = vector.load %arg5[%c0_8, %c0_9] : memref<128x128xf32, #tpu.memory_space<vmem>>, vector<128x128xf32>
    %cst_10 = arith.constant dense<0.000000e+00> : vector<8x128xf32>
    %15 = tpu.matmul %13, %14, %cst_10 {dimension_numbers = #tpu.dot_dimension_numbers<[1], [0], [0], [1], [0, 0, 1, 1], [], []>} : vector<8x128xf32>, vector<128x128xf32>, vector<8x128xf32> -> vector<8x128xf32>
    %c0_i32 = arith.constant 0 : i32
    %16 = arith.cmpi eq, %arg1, %c0_i32 : i32
    %17 = arith.extui %16 : i1 to i32
    %c0_i32_11 = arith.constant 0 : i32
    %18 = arith.cmpi ne, %17, %c0_i32_11 : i32
    scf.if %18 {
      %c0_16 = arith.constant 0 : index
      %c0_17 = arith.constant 0 : index
      %25 = vector.load %arg7[%c0_16, %c0_17] : memref<8x128xf32, #tpu.memory_space<vmem>>, vector<8x128xf32>
      tpu.vector_store %arg7[%c0_16, %c0_17], %15 {strides = array<i32>} : memref<8x128xf32, #tpu.memory_space<vmem>>, vector<8x128xf32>,
    } else {
    }
    %c0_i32_12 = arith.constant 0 : i32
    %19 = arith.cmpi ne, %arg1, %c0_i32_12 : i32
    %20 = arith.extui %19 : i1 to i32
    %c0_i32_13 = arith.constant 0 : i32
    %21 = arith.cmpi ne, %20, %c0_i32_13 : i32
    scf.if %21 {
      %c0_16 = arith.constant 0 : index
      %c0_17 = arith.constant 0 : index
      %25 = vector.load %arg7[%c0_16, %c0_17] : memref<8x128xf32, #tpu.memory_space<vmem>>, vector<8x128xf32>
      %26 = arith.addf %25, %15 : vector<8x128xf32>
      %c0_18 = arith.constant 0 : index
      %c0_19 = arith.constant 0 : index
      %27 = vector.load %arg7[%c0_18, %c0_19] : memref<8x128xf32, #tpu.memory_space<vmem>>, vector<8x128xf32>
      tpu.vector_store %arg7[%c0_18, %c0_19], %26 {strides = array<i32>} : memref<8x128xf32, #tpu.memory_space<vmem>>, vector<8x128xf32>,
    } else {
    }
    %c0_i32_14 = arith.constant 0 : i32
    %22 = arith.cmpi eq, %arg1, %c0_i32_14 : i32
    %23 = arith.extui %22 : i1 to i32
    %c0_i32_15 = arith.constant 0 : i32
    %24 = arith.cmpi ne, %23, %c0_i32_15 : i32
    scf.if %24 {
      %c0_16 = arith.constant 0 : index
      %c0_17 = arith.constant 0 : index
      %25 = vector.load %arg7[%c0_16, %c0_17] : memref<8x128xf32, #tpu.memory_space<vmem>>, vector<8x128xf32>
      %c0_18 = arith.constant 0 : index
      %c0_19 = arith.constant 0 : index
      %26 = vector.load %arg6[%c0_18, %c0_19] : memref<1x128xf32, #tpu.memory_space<vmem>>, vector<1x128xf32>
      %27 = vector.broadcast %26 : vector<1x128xf32> to vector<8x128xf32>
      %28 = arith.addf %25, %27 : vector<8x128xf32>
      %c0_20 = arith.constant 0 : index
      %c0_21 = arith.constant 0 : index
      %29 = vector.load %arg7[%c0_20, %c0_21] : memref<8x128xf32, #tpu.memory_space<vmem>>, vector<8x128xf32>
      tpu.vector_store %arg7[%c0_20, %c0_21], %28 {strides = array<i32>} : memref<8x128xf32, #tpu.memory_space<vmem>>, vector<8x128xf32>,
    } else {
    }
    return
  }
  func.func @transform_0(%arg0: i32, %arg1: i32) -> (i32, i32) {
    %c0_i32 = arith.constant 0 : i32
    %c0_i32_0 = arith.constant 0 : i32
    return %arg0, %c0_i32 : i32, i32
  }
  func.func @transform_1(%arg0: i32, %arg1: i32) -> (i32, i32) {
    %c0_i32 = arith.constant 0 : i32
    %c0_i32_0 = arith.constant 0 : i32
    return %c0_i32, %arg1 : i32, i32
  }
  func.func @transform_2(%arg0: i32, %arg1: i32) -> (i32, i32) {
    %c0_i32 = arith.constant 0 : i32
    %c0_i32_0 = arith.constant 0 : i32
    return %c0_i32, %arg1 : i32, i32
  }
  func.func @transform_3(%arg0: i32, %arg1: i32) -> (i32, i32) {
    %c0_i32 = arith.constant 0 : i32
    %c0_i32_0 = arith.constant 0 : i32
    return %arg1, %c0_i32 : i32, i32
  }
  func.func @transform_4(%arg0: i32, %arg1: i32) -> (i32, i32) {
    %c0_i32 = arith.constant 0 : i32
    %c0_i32_0 = arith.constant 0 : i32
    %c0_i32_1 = arith.constant 0 : i32
    return %c0_i32, %c0_i32_0 : i32, i32
  }
  func.func @transform_5(%arg0: i32, %arg1: i32) -> (i32, i32) {
    %c0_i32 = arith.constant 0 : i32
    %c0_i32_0 = arith.constant 0 : i32
    return %arg0, %c0_i32 : i32, i32
  }
}

</mosaic_0001>

<llo_original>
// kernel: position_wise_feed_forward.1
$region0: #{position_wise_feed_forward.1}
  #allocation0 [shape = 'u32[]', space=smem, size = 0x4, offset = 0x4, fixed_abs, tag = 'smem constant byte address 0x4 - core index']
  #allocation1 [shape = 'u32[144,128]{1,0:T(1,128)}', space=vmem, size = 0x12000, scoped, tag = 'internal scratch']
  %s0 = inlined_call_operand.vmem [shape: f32[16,128], index: 0, kind: input, shape index: {}]
  %s1 = inlined_call_operand.vmem [shape: f32[128,128], index: 1, kind: input, shape index: {}]
  %s2 = inlined_call_operand.vmem [shape: f32[1,128], index: 2, kind: input, shape index: {}]
  %s3 = inlined_call_operand.vmem [shape: f32[128,128], index: 3, kind: input, shape index: {}]
  %s4 = inlined_call_operand.vmem [shape: f32[1,128], index: 4, kind: input, shape index: {}]
  %s5 = inlined_call_operand.vmem [shape: f32[16,128], index: 5, kind: output, shape index: {}]
  %s6 = sld [smem:[#allocation0]]
  $region65: #{position_wise_feed_forward.1} parent=0
    _
  %s8 = ssub.s32 1, %s6
  %s9 = scalar_select 0, %s8, %s6
  loop: start=0, step=1, limit=4
  $region2: #{position_wise_feed_forward.1} parent=0 // loop_pre_header
    _
  $region3: #{position_wise_feed_forward.1} parent=0 // loop_header
    %s11 = sphi 0, %s15
    %p12 = scmp.ge.s32.totalorder %s11, 4
    %s18 = sphi 0, %s30
    %s19 = sphi 0, %s26
    %s20 = sphi 0, %s18
    %s21 = sphi 0, %s19
    %s22 = sphi 0, %s20
    %s23 = sphi 0, %s21
    %s33 = sphi 0, %s35
    %s36 = sphi 0, %s33
    %s37 = sphi 0, %s36
    %s53 = sphi 0, %s37
    %s59 = sphi 0, %s61
    %s62 = sphi 0, %s59
    %s63 = sphi 0, %s62
    %s79 = sphi 0, %s63
    %s85 = sphi 0, %s87
    %s88 = sphi 0, %s85
    %s89 = sphi 0, %s88
    %s105 = sphi 0, %s89
    %s111 = sphi 0, %s113
    %s114 = sphi 0, %s111
    %s115 = sphi 0, %s114
    %s131 = sphi 0, %s115
    %s135 = sphi 0, %s135
    %s137 = sphi 0, %s135
    %s138 = sphi 0, %s137
    %s152 = sphi 0, %s138
    %s158 = sphi 0, %s160
    %s161 = sphi 0, %s158
    %s162 = sphi 0, %s161
    %s178 = sphi 0, %s162
  $region4: #{position_wise_feed_forward.1} parent=0 // loop_header_branch
    %14 = sbr.rel (%p12) target = $region8
  $region5: #{position_wise_feed_forward.1} parent=0 // loop_body
    %s16 = ssub.s32 %s11, 1
    %s17 = ssub.s32 %s11, 2
    %s24 = sadd.s32 1, %s19
    %p25 = scmp.ge.s32.totalorder %s24, 1
    %s26 = scalar_select %p25, 0, %s24
    %s27 = sadd.s32 1, %s18
    %s28 = scalar_select %p25, %s27, %s18
    %p29 = scmp.ge.s32.totalorder %s28, 2
    %s30 = scalar_select %p29, 0, %s28
    %s31 = ssub.s32 %s18, %s30
    %p32 = scmp.eq.s32.totalorder %s31, 0
    %s34 = sadd.s32 %s33, 1
    %s35 = scalar_select %p32, %s33, %s34
    %p38 = pneg %p32
    %p39 = scmp.eq.s32.totalorder %s11, 1
    %p40 = por %p38, %p39
    %p41 = scmp.ne.s32.totalorder %s33, %s36
    %p42 = scmp.eq.s32.totalorder %s11, 0
    %p43 = por %p41, %p42
    %p44 = scmp.ne.s32.totalorder %s33, %s36
    %p45 = scmp.eq.s32.totalorder %s16, 1
    %p46 = por %p44, %p45
    %p47 = scmp.ne.s32.totalorder %s36, %s37
    %p48 = scmp.eq.s32.totalorder %s16, 0
    %p49 = por %p47, %p48
    %p50 = scmp.ne.s32.totalorder %s36, %s37
    %p51 = scmp.eq.s32.totalorder %s17, 1
    %p52 = por %p50, %p51
    %p54 = scmp.ne.s32.totalorder %s37, %s53
    %p55 = scmp.eq.s32.totalorder %s17, 0
    %p56 = por %p54, %p55
    %s57 = ssub.s32 %s19, %s26
    %p58 = scmp.eq.s32.totalorder %s57, 0
    %s60 = sadd.s32 %s59, 1
    %s61 = scalar_select %p58, %s59, %s60
    %p64 = pneg %p58
    %p65 = scmp.eq.s32.totalorder %s11, 1
    %p66 = por %p64, %p65
    %p67 = scmp.ne.s32.totalorder %s59, %s62
    %p68 = scmp.eq.s32.totalorder %s11, 0
    %p69 = por %p67, %p68
    %p70 = scmp.ne.s32.totalorder %s59, %s62
    %p71 = scmp.eq.s32.totalorder %s16, 1
    %p72 = por %p70, %p71
    %p73 = scmp.ne.s32.totalorder %s62, %s63
    %p74 = scmp.eq.s32.totalorder %s16, 0
    %p75 = por %p73, %p74
    %p76 = scmp.ne.s32.totalorder %s62, %s63
    %p77 = scmp.eq.s32.totalorder %s17, 1
    %p78 = por %p76, %p77
    %p80 = scmp.ne.s32.totalorder %s63, %s79
    %p81 = scmp.eq.s32.totalorder %s17, 0
    %p82 = por %p80, %p81
    %s83 = ssub.s32 %s19, %s26
    %p84 = scmp.eq.s32.totalorder %s83, 0
    %s86 = sadd.s32 %s85, 1
    %s87 = scalar_select %p84, %s85, %s86
    %p90 = pneg %p84
    %p91 = scmp.eq.s32.totalorder %s11, 1
    %p92 = por %p90, %p91
    %p93 = scmp.ne.s32.totalorder %s85, %s88
    %p94 = scmp.eq.s32.totalorder %s11, 0
    %p95 = por %p93, %p94
    %p96 = scmp.ne.s32.totalorder %s85, %s88
    %p97 = scmp.eq.s32.totalorder %s16, 1
    %p98 = por %p96, %p97
    %p99 = scmp.ne.s32.totalorder %s88, %s89
    %p100 = scmp.eq.s32.totalorder %s16, 0
    %p101 = por %p99, %p100
    %p102 = scmp.ne.s32.totalorder %s88, %s89
    %p103 = scmp.eq.s32.totalorder %s17, 1
    %p104 = por %p102, %p103
    %p106 = scmp.ne.s32.totalorder %s89, %s105
    %p107 = scmp.eq.s32.totalorder %s17, 0
    %p108 = por %p106, %p107
    %s109 = ssub.s32 %s19, %s26
    %p110 = scmp.eq.s32.totalorder %s109, 0
    %s112 = sadd.s32 %s111, 1
    %s113 = scalar_select %p110, %s111, %s112
    %p116 = pneg %p110
    %p117 = scmp.eq.s32.totalorder %s11, 1
    %p118 = por %p116, %p117
    %p119 = scmp.ne.s32.totalorder %s111, %s114
    %p120 = scmp.eq.s32.totalorder %s11, 0
    %p121 = por %p119, %p120
    %p122 = scmp.ne.s32.totalorder %s111, %s114
    %p123 = scmp.eq.s32.totalorder %s16, 1
    %p124 = por %p122, %p123
    %p125 = scmp.ne.s32.totalorder %s114, %s115
    %p126 = scmp.eq.s32.totalorder %s16, 0
    %p127 = por %p125, %p126
    %p128 = scmp.ne.s32.totalorder %s114, %s115
    %p129 = scmp.eq.s32.totalorder %s17, 1
    %p130 = por %p128, %p129
    %p132 = scmp.ne.s32.totalorder %s115, %s131
    %p133 = scmp.eq.s32.totalorder %s17, 0
    %p134 = por %p132, %p133
    %s136 = sadd.s32 %s135, 1
    %p139 = scmp.eq.s32.totalorder %s11, 1
    %p140 = scmp.ne.s32.totalorder %s135, %s137
    %p141 = scmp.eq.s32.totalorder %s11, 0
    %p142 = por %p140, %p141
    %p143 = scmp.ne.s32.totalorder %s135, %s137
    %p144 = scmp.eq.s32.totalorder %s16, 1
    %p145 = por %p143, %p144
    %p146 = scmp.ne.s32.totalorder %s137, %s138
    %p147 = scmp.eq.s32.totalorder %s16, 0
    %p148 = por %p146, %p147
    %p149 = scmp.ne.s32.totalorder %s137, %s138
    %p150 = scmp.eq.s32.totalorder %s17, 1
    %p151 = por %p149, %p150
    %p153 = scmp.ne.s32.totalorder %s138, %s152
    %p154 = scmp.eq.s32.totalorder %s17, 0
    %p155 = por %p153, %p154
    %s156 = ssub.s32 %s18, %s30
    %p157 = scmp.eq.s32.totalorder %s156, 0
    %s159 = sadd.s32 %s158, 1
    %s160 = scalar_select %p157, %s158, %s159
    %p163 = pneg %p157
    %p164 = scmp.eq.s32.totalorder %s11, 1
    %p165 = por %p163, %p164
    %p166 = scmp.ne.s32.totalorder %s158, %s161
    %p167 = scmp.eq.s32.totalorder %s11, 0
    %p168 = por %p166, %p167
    %p169 = scmp.ne.s32.totalorder %s158, %s161
    %p170 = scmp.eq.s32.totalorder %s16, 1
    %p171 = por %p169, %p170
    %p172 = scmp.ne.s32.totalorder %s161, %s162
    %p173 = scmp.eq.s32.totalorder %s16, 0
    %p174 = por %p172, %p173
    %p175 = scmp.ne.s32.totalorder %s161, %s162
    %p176 = scmp.eq.s32.totalorder %s17, 1
    %p177 = por %p175, %p176
    %p179 = scmp.ne.s32.totalorder %s162, %s178
    %p180 = scmp.eq.s32.totalorder %s17, 0
    %p181 = por %p179, %p180
    %p182 = scmp.le.s32.totalorder 1, %s11
    %p183 = scmp.lt.s32.totalorder %s11, 3
    %p184 = pnand %p182, %p183
    %p185 = pneg %p184
    // Predicated region
    $region9: #{position_wise_feed_forward.1} parent=5 // pred_check
      _
    $region10: #{position_wise_feed_forward.1} parent=5 // pred_check_branch
      %187 = sbr.rel (%p184) target = $region12
    $region11: #{position_wise_feed_forward.1} parent=5 // pred_region
      %s188 = ssub.s32 %s11, 1
      // Predicated region
      $region13: #{position_wise_feed_forward.1} parent=11 // pred_check
        %p189 = pneg %p75
      $region14: #{position_wise_feed_forward.1} parent=11 // pred_check_branch
        %191 = sbr.rel (%p189) target = $region16
      $region15: #{position_wise_feed_forward.1} parent=11 // pred_region
        %p192 = scmp.lt.s32.totalorder %s21, 0
        %s193 = scalar_select %p192, %s21, 0
        %s194 = smul.addr %s193, 8
        %s195 = scalar_lea.vmem %s1, %s194
      $region16: #{position_wise_feed_forward.1} parent=11 // pred_fallthru
        _
      // Predicated region
      $region17: #{position_wise_feed_forward.1} parent=11 // pred_check
        %p196 = pneg %p101
      $region18: #{position_wise_feed_forward.1} parent=11 // pred_check_branch
        %198 = sbr.rel (%p196) target = $region20
      $region19: #{position_wise_feed_forward.1} parent=11 // pred_region
        %p199 = scmp.lt.s32.totalorder %s21, 0
        %s200 = scalar_select %p199, %s21, 0
        %s201 = scalar_lea.vmem %s2, %s200
      $region20: #{position_wise_feed_forward.1} parent=11 // pred_fallthru
        _
      // Predicated region
      $region21: #{position_wise_feed_forward.1} parent=11 // pred_check
        %p202 = pneg %p127
      $region22: #{position_wise_feed_forward.1} parent=11 // pred_check_branch
        %204 = sbr.rel (%p202) target = $region24
      $region23: #{position_wise_feed_forward.1} parent=11 // pred_region
        %s205 = smul.u32 16, %s21
        %p206 = scmp.lt.s32.totalorder %s205, 15
        %s207 = scalar_select %p206, %s205, 15
        %s208 = smul.addr %s207, 8
        %s209 = scalar_lea.vmem %s3, %s208
        %s210 = smul.u32 16, %s21
      $region24: #{position_wise_feed_forward.1} parent=11 // pred_fallthru
        _
      // Predicated region
      $region25: #{position_wise_feed_forward.1} parent=11 // pred_check
        %p211 = pneg %p148
      $region26: #{position_wise_feed_forward.1} parent=11 // pred_check_branch
        %213 = sbr.rel (%p211) target = $region28
      $region27: #{position_wise_feed_forward.1} parent=11 // pred_region
        _
      $region28: #{position_wise_feed_forward.1} parent=11 // pred_fallthru
        _
    $region12: #{position_wise_feed_forward.1} parent=5 // pred_fallthru
      _
    %p214 = scmp.lt.s32.totalorder %s11, 2
    // Predicated region
    $region29: #{position_wise_feed_forward.1} parent=5 // pred_check
      %p215 = pneg %p214
    $region30: #{position_wise_feed_forward.1} parent=5 // pred_check_branch
      %217 = sbr.rel (%p215) target = $region32
    $region31: #{position_wise_feed_forward.1} parent=5 // pred_region
      // Predicated region
      $region33: #{position_wise_feed_forward.1} parent=31 // pred_check
        %p218 = pneg %p43
      $region34: #{position_wise_feed_forward.1} parent=31 // pred_check_branch
        %220 = sbr.rel (%p218) target = $region36
      $region35: #{position_wise_feed_forward.1} parent=31 // pred_region
        %p221 = scmp.lt.s32.totalorder %s18, 1
        %s222 = scalar_select %p221, %s18, 1
        %s223 = smul.addr %s222, 8
        %s224 = scalar_lea.vmem %s0, %s223
      $region36: #{position_wise_feed_forward.1} parent=31 // pred_fallthru
        _
    $region32: #{position_wise_feed_forward.1} parent=5 // pred_fallthru
      _
    %p225 = scmp.le.s32.totalorder 1, %s11
    %p226 = scmp.lt.s32.totalorder %s11, 3
    %p227 = pnand %p225, %p226
    %p228 = pneg %p227
    // Predicated region
    $region37: #{position_wise_feed_forward.1} parent=5 // pred_check
      _
    $region38: #{position_wise_feed_forward.1} parent=5 // pred_check_branch
      %230 = sbr.rel (%p227) target = $region40
    $region39: #{position_wise_feed_forward.1} parent=5 // pred_region
      %s231 = ssub.s32 %s11, 1
      %p232 = scmp.lt.s32.totalorder %s20, 1
      %s233 = scalar_select %p232, %s20, 1
      %s234 = smul.addr %s233, 8
      %s235 = scalar_lea.vmem %s0, %s234
      %p236 = pneg %p49
      %p237 = pneg %p46
      %p238 = scmp.lt.s32.totalorder %s21, 0
      %s239 = scalar_select %p238, %s21, 0
      %s240 = smul.addr %s239, 8
      %s241 = scalar_lea.vmem %s1, %s240
      %p242 = pneg %p75
      %p243 = pneg %p72
      %p244 = scmp.lt.s32.totalorder %s21, 0
      %s245 = scalar_select %p244, %s21, 0
      %s246 = scalar_lea.vmem %s2, %s245
      %p247 = pneg %p101
      %p248 = pneg %p98
      %s249 = smul.u32 16, %s21
      %p250 = scmp.lt.s32.totalorder %s249, 15
      %s251 = scalar_select %p250, %s249, 15
      %s252 = smul.addr %s251, 8
      %s253 = scalar_lea.vmem %s3, %s252
      %p254 = pneg %p127
      %p255 = pneg %p124
      %p256 = pneg %p148
      %p257 = pneg %p145
      %p258 = pneg %p174
      %p259 = pneg %p171
      %p260 = scmp.lt.s32.totalorder %s20, 1
      %s261 = scalar_select %p260, %s20, 1
      %s262 = smul.addr %s261, 8
      %s263 = scalar_lea.vmem %s5, %s262
      %p264 = scmp.lt.s32.totalorder %s20, 1
      %s265 = scalar_select %p264, %s20, 1
      %s266 = smul.addr %s265, 8
      %s267 = scalar_lea.vmem %s0, %s266
      %p268 = scmp.lt.s32.totalorder %s21, 0
      %s269 = scalar_select %p268, %s21, 0
      %s270 = smul.addr %s269, 8
      %s271 = scalar_lea.vmem %s1, %s270
      %p272 = scmp.lt.s32.totalorder %s21, 0
      %s273 = scalar_select %p272, %s21, 0
      %s274 = scalar_lea.vmem %s2, %s273
      %s275 = smul.u32 16, %s21
      %p276 = scmp.lt.s32.totalorder %s275, 15
      %s277 = scalar_select %p276, %s275, 15
      %s278 = smul.addr %s277, 8
      %s279 = scalar_lea.vmem %s3, %s278
      %s280 = smul.u32 16, %s21
      %p281 = scmp.lt.s32.totalorder %s20, 1
      %s282 = scalar_select %p281, %s20, 1
      %s283 = smul.addr %s282, 8
      %s284 = scalar_lea.vmem %s5, %s283
      %v285 = vld [vmem:[%s267] sm:$0xff]
      %v286 = vld [vmem:[%s271] sm:$0xff]
      %v287 = vld [vmem:[%s271 + $0x8] sm:$0xff]
      %v288 = vld [vmem:[%s271 + $0x10] sm:$0xff]
      %v289 = vld [vmem:[%s271 + $0x18] sm:$0xff]
      %v290 = vld [vmem:[%s271 + $0x20] sm:$0xff]
      %v291 = vld [vmem:[%s271 + $0x28] sm:$0xff]
      %v292 = vld [vmem:[%s271 + $0x30] sm:$0xff]
      %v293 = vld [vmem:[%s271 + $0x38] sm:$0xff]
      %v294 = vld [vmem:[%s271 + $0x40] sm:$0xff]
      %v295 = vld [vmem:[%s271 + $0x48] sm:$0xff]
      %v296 = vld [vmem:[%s271 + $0x50] sm:$0xff]
      %v297 = vld [vmem:[%s271 + $0x58] sm:$0xff]
      %v298 = vld [vmem:[%s271 + $0x60] sm:$0xff]
      %v299 = vld [vmem:[%s271 + $0x68] sm:$0xff]
      %v300 = vld [vmem:[%s271 + $0x70] sm:$0xff]
      %v301 = vld [vmem:[%s271 + $0x78] sm:$0xff]
      %v302 = vld [vmem:[%s274] sm:$0x1]
      %v304 = vlaneseq
      %v305 = vshrl.u32 %v304, 7
      %v306 = vsub.s32 0, %v305
      %v307 = vrot.slane %v302, %v306
      %309 = vmatprep.subr.mxu0 0.0
      %310 = vmatpush1.msra.mxu0 %v286
      %311 = vmatprep.subr.mxu0 0.0
      %312 = vmatpush1.msra.mxu0 %v287
      %313 = vmatprep.subr.mxu0 0.0
      %314 = vmatpush1.msra.mxu0 %v288
      %315 = vmatprep.subr.mxu0 0.0
      %316 = vmatpush1.msra.mxu0 %v289
      %317 = vmatprep.subr.mxu0 0.0
      %318 = vmatpush1.msra.mxu0 %v290
      %319 = vmatprep.subr.mxu0 0.0
      %320 = vmatpush1.msra.mxu0 %v291
      %321 = vmatprep.subr.mxu0 0.0
      %322 = vmatpush1.msra.mxu0 %v292
      %323 = vmatprep.subr.mxu0 0.0
      %324 = vmatpush1.msra.mxu0 %v293
      %325 = vmatprep.subr.mxu0 0.0
      %326 = vmatpush1.msra.mxu0 %v294
      %327 = vmatprep.subr.mxu0 0.0
      %328 = vmatpush1.msra.mxu0 %v295
      %329 = vmatprep.subr.mxu0 0.0
      %330 = vmatpush1.msra.mxu0 %v296
      %331 = vmatprep.subr.mxu0 0.0
      %332 = vmatpush1.msra.mxu0 %v297
      %333 = vmatprep.subr.mxu0 0.0
      %334 = vmatpush1.msra.mxu0 %v298
      %335 = vmatprep.subr.mxu0 0.0
      %336 = vmatpush1.msra.mxu0 %v299
      %337 = vmatprep.subr.mxu0 0.0
      %338 = vmatpush1.msra.mxu0 %v300
      %339 = vmatprep.subr.mxu0 0.0
      %340 = vmatpush1.msra.mxu0 %v301
      %341 = vmatprep.subr.mxu0 0.0
      %342 = vmatpush1.msra.mxu0 0.0
      %343 = vmatprep.subr.mxu0 0.0
      %344 = vmatpush1.msra.mxu0 0.0
      %345 = vmatprep.subr.mxu0 0.0
      %346 = vmatpush1.msra.mxu0 0.0
      %347 = vmatprep.subr.mxu0 0.0
      %348 = vmatpush1.msra.mxu0 0.0
      %349 = vmatprep.subr.mxu0 0.0
      %350 = vmatpush1.msra.mxu0 0.0
      %351 = vmatprep.subr.mxu0 0.0
      %352 = vmatpush1.msra.mxu0 0.0
      %353 = vmatprep.subr.mxu0 0.0
      %354 = vmatpush1.msra.mxu0 0.0
      %355 = vmatprep.subr.mxu0 0.0
      %356 = vmatpush1.msra.mxu0 0.0
      %357 = vmatprep.subr.mxu0 0.0
      %358 = vmatpush1.msra.mxu0 0.0
      %359 = vmatprep.subr.mxu0 0.0
      %360 = vmatpush1.msra.mxu0 0.0
      %361 = vmatprep.subr.mxu0 0.0
      %362 = vmatpush1.msra.mxu0 0.0
      %363 = vmatprep.subr.mxu0 0.0
      %364 = vmatpush1.msra.mxu0 0.0
      %365 = vmatprep.subr.mxu0 0.0
      %366 = vmatpush1.msra.mxu0 0.0
      %367 = vmatprep.subr.mxu0 0.0
      %368 = vmatpush1.msra.mxu0 0.0
      %369 = vmatprep.subr.mxu0 0.0
      %370 = vmatpush1.msra.mxu0 0.0
      %371 = vmatprep.subr.mxu0 0.0
      %372 = vmatpush1.msra.mxu0 0.0
      %373 = vmatprep.mubr.f32.mxu0 0.0
      %374 = vmatmul.mubr.f32.gmra.mrb[0].mxu0 %v285
      %v375 = vpop.f32.mrb[0].mxu0
      %v376 = vadd.f32 %v307, %v375
      %v377 = vpop.f32.mrb[0].mxu0
      %378 = vdwg.mxu0
      %v379 = vmul.f32 %v376, 0.5
      %v380 = vmul.f32 %v376, 0.70710677
      %v381 = verf.f32.pop %v380
      %v382 = vadd.f32 %v381, 1.0
      %v383 = vmul.f32 %v379, %v382
      %v384 = vld [vmem:[%s279] sm:$0xff]
      %v385 = vld [vmem:[%s279 + $0x8] sm:$0xff]
      %v386 = vld [vmem:[%s279 + $0x10] sm:$0xff]
      %v387 = vld [vmem:[%s279 + $0x18] sm:$0xff]
      %v388 = vld [vmem:[%s279 + $0x20] sm:$0xff]
      %v389 = vld [vmem:[%s279 + $0x28] sm:$0xff]
      %v390 = vld [vmem:[%s279 + $0x30] sm:$0xff]
      %v391 = vld [vmem:[%s279 + $0x38] sm:$0xff]
      %v392 = vld [vmem:[%s279 + $0x40] sm:$0xff]
      %v393 = vld [vmem:[%s279 + $0x48] sm:$0xff]
      %v394 = vld [vmem:[%s279 + $0x50] sm:$0xff]
      %v395 = vld [vmem:[%s279 + $0x58] sm:$0xff]
      %v396 = vld [vmem:[%s279 + $0x60] sm:$0xff]
      %v397 = vld [vmem:[%s279 + $0x68] sm:$0xff]
      %v398 = vld [vmem:[%s279 + $0x70] sm:$0xff]
      %v399 = vld [vmem:[%s279 + $0x78] sm:$0xff]
      %400 = vmatprep.subr.mxu0 0.0
      %401 = vmatpush1.msra.mxu0 %v384
      %402 = vmatprep.subr.mxu0 0.0
      %403 = vmatpush1.msra.mxu0 %v385
      %404 = vmatprep.subr.mxu0 0.0
      %405 = vmatpush1.msra.mxu0 %v386
      %406 = vmatprep.subr.mxu0 0.0
      %407 = vmatpush1.msra.mxu0 %v387
      %408 = vmatprep.subr.mxu0 0.0
      %409 = vmatpush1.msra.mxu0 %v388
      %410 = vmatprep.subr.mxu0 0.0
      %411 = vmatpush1.msra.mxu0 %v389
      %412 = vmatprep.subr.mxu0 0.0
      %413 = vmatpush1.msra.mxu0 %v390
      %414 = vmatprep.subr.mxu0 0.0
      %415 = vmatpush1.msra.mxu0 %v391
      %416 = vmatprep.subr.mxu0 0.0
      %417 = vmatpush1.msra.mxu0 %v392
      %418 = vmatprep.subr.mxu0 0.0
      %419 = vmatpush1.msra.mxu0 %v393
      %420 = vmatprep.subr.mxu0 0.0
      %421 = vmatpush1.msra.mxu0 %v394
      %422 = vmatprep.subr.mxu0 0.0
      %423 = vmatpush1.msra.mxu0 %v395
      %424 = vmatprep.subr.mxu0 0.0
      %425 = vmatpush1.msra.mxu0 %v396
      %426 = vmatprep.subr.mxu0 0.0
      %427 = vmatpush1.msra.mxu0 %v397
      %428 = vmatprep.subr.mxu0 0.0
      %429 = vmatpush1.msra.mxu0 %v398
      %430 = vmatprep.subr.mxu0 0.0
      %431 = vmatpush1.msra.mxu0 %v399
      %432 = vmatprep.subr.mxu0 0.0
      %433 = vmatpush1.msra.mxu0 0.0
      %434 = vmatprep.subr.mxu0 0.0
      %435 = vmatpush1.msra.mxu0 0.0
      %436 = vmatprep.subr.mxu0 0.0
      %437 = vmatpush1.msra.mxu0 0.0
      %438 = vmatprep.subr.mxu0 0.0
      %439 = vmatpush1.msra.mxu0 0.0
      %440 = vmatprep.subr.mxu0 0.0
      %441 = vmatpush1.msra.mxu0 0.0
      %442 = vmatprep.subr.mxu0 0.0
      %443 = vmatpush1.msra.mxu0 0.0
      %444 = vmatprep.subr.mxu0 0.0
      %445 = vmatpush1.msra.mxu0 0.0
      %446 = vmatprep.subr.mxu0 0.0
      %447 = vmatpush1.msra.mxu0 0.0
      %448 = vmatprep.subr.mxu0 0.0
      %449 = vmatpush1.msra.mxu0 0.0
      %450 = vmatprep.subr.mxu0 0.0
      %451 = vmatpush1.msra.mxu0 0.0
      %452 = vmatprep.subr.mxu0 0.0
      %453 = vmatpush1.msra.mxu0 0.0
      %454 = vmatprep.subr.mxu0 0.0
      %455 = vmatpush1.msra.mxu0 0.0
      %456 = vmatprep.subr.mxu0 0.0
      %457 = vmatpush1.msra.mxu0 0.0
      %458 = vmatprep.subr.mxu0 0.0
      %459 = vmatpush1.msra.mxu0 0.0
      %460 = vmatprep.subr.mxu0 0.0
      %461 = vmatpush1.msra.mxu0 0.0
      %462 = vmatprep.subr.mxu0 0.0
      %463 = vmatpush1.msra.mxu0 0.0
      %464 = vmatprep.mubr.f32.mxu0 0.0
      %465 = vmatmul.mubr.f32.gmra.mrb[0].mxu0 %v383
      %v466 = vpop.f32.mrb[0].mxu0
      %v467 = vadd.f32 0.0, %v466
      %v468 = vpop.f32.mrb[0].mxu0
      %469 = vdwg.mxu0
      %p470 = scmp.eq.s32.totalorder %s21, 0
      // Predicated region
      $region41: #{position_wise_feed_forward.1} parent=39 // pred_check
        %p471 = pneg %p470
      $region42: #{position_wise_feed_forward.1} parent=39 // pred_check_branch
        %473 = sbr.rel (%p471) target = $region44
      $region43: #{position_wise_feed_forward.1} parent=39 // pred_region
        %474 = vst [vmem:[%s284] sm:$0xff] %v467
      $region44: #{position_wise_feed_forward.1} parent=39 // pred_fallthru
        _
      %p475 = scmp.ne.s32.totalorder %s21, 0
      // Predicated region
      $region45: #{position_wise_feed_forward.1} parent=39 // pred_check
        %p476 = pneg %p475
      $region46: #{position_wise_feed_forward.1} parent=39 // pred_check_branch
        %478 = sbr.rel (%p476) target = $region48
      $region47: #{position_wise_feed_forward.1} parent=39 // pred_region
        %v479 = vld [vmem:[%s284] sm:$0xff]
        %v480 = vadd.f32 %v479, %v467
        %481 = vst [vmem:[%s284] sm:$0xff] %v480
      $region48: #{position_wise_feed_forward.1} parent=39 // pred_fallthru
        _
      // Predicated region
      $region49: #{position_wise_feed_forward.1} parent=39 // pred_check
        %p482 = pneg %p470
      $region50: #{position_wise_feed_forward.1} parent=39 // pred_check_branch
        %484 = sbr.rel (%p482) target = $region52
      $region51: #{position_wise_feed_forward.1} parent=39 // pred_region
        %v485 = vld [vmem:[%s284] sm:$0xff]
        %v486 = vld [vmem:[%s4] sm:$0x1]
        %v488 = vlaneseq
        %v489 = vshrl.u32 %v488, 7
        %v490 = vsub.s32 0, %v489
        %v491 = vrot.slane %v486, %v490
        %v493 = vadd.f32 %v485, %v491
        %494 = vst [vmem:[%s284] sm:$0xff] %v493
      $region52: #{position_wise_feed_forward.1} parent=39 // pred_fallthru
        _
      %p495 = scmp.lt.s32.totalorder %s20, 1
      %s496 = scalar_select %p495, %s20, 1
      %s497 = smul.addr %s496, 8
      %s498 = scalar_lea.vmem %s5, %s497
      // Predicated region
      $region53: #{position_wise_feed_forward.1} parent=39 // pred_check
        %p499 = pneg %p171
      $region54: #{position_wise_feed_forward.1} parent=39 // pred_check_branch
        %501 = sbr.rel (%p499) target = $region56
      $region55: #{position_wise_feed_forward.1} parent=39 // pred_region
        _
      $region56: #{position_wise_feed_forward.1} parent=39 // pred_fallthru
        _
    $region40: #{position_wise_feed_forward.1} parent=5 // pred_fallthru
      _
    %p502 = scmp.le.s32.totalorder 2, %s11
    // Predicated region
    $region57: #{position_wise_feed_forward.1} parent=5 // pred_check
      %p503 = pneg %p502
    $region58: #{position_wise_feed_forward.1} parent=5 // pred_check_branch
      %505 = sbr.rel (%p503) target = $region60
    $region59: #{position_wise_feed_forward.1} parent=5 // pred_region
      %s506 = ssub.s32 %s11, 2
      // Predicated region
      $region61: #{position_wise_feed_forward.1} parent=59 // pred_check
        %p507 = pneg %p177
      $region62: #{position_wise_feed_forward.1} parent=59 // pred_check_branch
        %509 = sbr.rel (%p507) target = $region64
      $region63: #{position_wise_feed_forward.1} parent=59 // pred_region
        %p510 = scmp.lt.s32.totalorder %s22, 1
        %s511 = scalar_select %p510, %s22, 1
        %s512 = smul.addr %s511, 8
        %s513 = scalar_lea.vmem %s5, %s512
      $region64: #{position_wise_feed_forward.1} parent=59 // pred_fallthru
        _
    $region60: #{position_wise_feed_forward.1} parent=5 // pred_fallthru
      _
  $region6: #{position_wise_feed_forward.1} parent=0 // loop_footer
    %s15 = sadd.s32 1, %s11
  $region7: #{position_wise_feed_forward.1} parent=0 // loop_footer_branch
    %10 = sbr.rel target = $region3
  $region8: #{position_wise_feed_forward.1} parent=0 // loop_exit
    _

</llo_original>
